<compile_context>
chip_gen: v6e
topology: v6e:2x2x1
jax: 0.10.0
libtpu: 0.0.40
codegen_flags: <defaults>
</compile_context>

<pallas_src>
import jax
import jax.numpy as jnp
from jax import lax
from jax.experimental import pallas as pl
from jax.experimental.pallas import tpu as pltpu


def _round_up(x, m):
    return ((x + m - 1) // m) * m


# ---------------------------------------------------------------------------
# Kernel: one batch tile, batch on lanes.
#   x_ref : (TILE_B, F) natural layout          o_ref : (1, TILE_B)
#   w*/b* : tiny pre-transposed params, constant index_map -> VMEM-resident.
# ---------------------------------------------------------------------------
def _ann_kernel(w1t_ref, b1t_ref, w2t_ref, b2t_ref, w3t_ref, b3t_ref,
                x_ref, o_ref):
    x = x_ref[...]                                    # (TILE_B, F)

    # Layer 0: Linear(F -> H) + ReLU, computed transposed: h1 = W1.T @ x.T.
    # Contract x's last (feature) axis (== trans_b matmul) so the batch lands
    # on lanes; the in-kernel relayout of x hides under the x DMA since the
    # kernel is bandwidth-bound.
    h1 = lax.dot_general(w1t_ref[...], x,
                         dimension_numbers=(((1,), (1,)), ((), ())),
                         preferred_element_type=jnp.float32)
    h1 = jnp.maximum(h1 + b1t_ref[...], 0.0)          # (H, TILE_B)

    # Layer 1: Linear(H -> H) + ReLU.
    h2 = jnp.dot(w2t_ref[...], h1, preferred_element_type=jnp.float32)
    h2 = jnp.maximum(h2 + b2t_ref[...], 0.0)          # (H, TILE_B)

    # Output layer: Linear(H -> 1) + numerically stable sigmoid.
    z = jnp.dot(w3t_ref[...], h2, preferred_element_type=jnp.float32)
    z = z + b3t_ref[...]                              # (1, TILE_B)
    s = 1.0 / (1.0 + jnp.exp(-jnp.abs(z)))            # exp arg <= 0: no inf
    o_ref[...] = jnp.where(z >= 0.0, s, 1.0 - s)      # lane-dense store


# ---------------------------------------------------------------------------
# Wrapper: stream x in its natural (B, F) layout, tile over the batch.
# ---------------------------------------------------------------------------
def ann_forward(x, params, *, tile_b=16384):
    """x: (B, input_feature) f32. params: W/b stored as (in, out) / (1, out)."""
    B, F = x.shape

    # Tiny transposed parameter copies (cost negligible vs. x traffic).
    w1t = params["W1"].T.astype(jnp.float32)          # (H, F)
    b1t = params["b1"].T.astype(jnp.float32)          # (H, 1)
    w2t = params["W2"].T.astype(jnp.float32)          # (H, H)
    b2t = params["b2"].T.astype(jnp.float32)          # (H, 1)
    w3t = params["W3"].T.astype(jnp.float32)          # (1, H)
    b3t = params["b3"].T.astype(jnp.float32)          # (1, 1)

    # Batch tiling:
    #  * tile_b is the lane dim of the output block -> round caller value up
    #    to a multiple of 128;
    #  * small batches use a single block equal to the full arrays (always
    #    legal w.r.t. the (8,128) rule);
    #  * large batches cap the tile so the grid has >= 2 steps, letting the
    #    "parallel" batch axis split across v7x's two TensorCores.
    tile_b = max(128, _round_up(int(tile_b), 128))
    if B <= 256:
        tile_b = B
    else:
        tile_b = min(tile_b, _round_up((B + 1) // 2, 128))
    grid = pl.cdiv(B, tile_b)

    const_map = lambda i: (0, 0)
    param_spec = lambda a: pl.BlockSpec(a.shape, const_map)   # resident params

    outT = pl.pallas_call(
        _ann_kernel,
        out_shape=jax.ShapeDtypeStruct((1, B), jnp.float32),
        grid=(grid,),
        in_specs=[
            param_spec(w1t), param_spec(b1t),
            param_spec(w2t), param_spec(b2t),
            param_spec(w3t), param_spec(b3t),
            # x streamed directly from its natural (B, F) layout; boundary
            # blocks (B % tile_b != 0) read undefined rows which only affect
            # their own output lanes, and those stores are dropped.
            pl.BlockSpec((tile_b, F), lambda i: (i, 0)),
        ],
        out_specs=pl.BlockSpec((1, tile_b), lambda i: (0, i)),
        compiler_params=pltpu.CompilerParams(
            dimension_semantics=("parallel",),        # megacore on v7x
            vmem_limit_bytes=32 * 1024 * 1024,        # headroom on v5e default
        ),
    )(w1t, b1t, w2t, b2t, w3t, b3t, x.astype(jnp.float32))

    # (1, B) batch-on-lanes -> (B, 1). Padded lanes were never written.
    return outT.reshape(B, 1)


# ---------------------------------------------------------------------------
# Synthetic init (kaiming-uniform-like) and pure-JAX reference.
# Weights stored as (in_features, out_features); biases as (1, out_features).
# ---------------------------------------------------------------------------
def init_params(key, input_feature=32, num_hidden_layers=3, num_hidden_size=5):
    def kaiming_uniform(key, fan_in, fan_out):
        bound = jnp.sqrt(6.0 / fan_in)
        return jax.random.uniform(key, (fan_in, fan_out), jnp.float32,
                                  minval=-bound, maxval=bound)

    def bias_uniform(key, fan_in, fan_out):
        bound = 1.0 / jnp.sqrt(fan_in)
        return jax.random.uniform(key, (1, fan_out), jnp.float32,
                                  minval=-bound, maxval=bound)

    keys = jax.random.split(key, 6)
    H, F = num_hidden_size, input_feature
    return {
        "W1": kaiming_uniform(keys[0], F, H),
        "b1": bias_uniform(keys[1], F, H),
        "W2": kaiming_uniform(keys[2], H, H),
        "b2": bias_uniform(keys[3], H, H),
        "W3": kaiming_uniform(keys[4], H, 1),
        "b3": bias_uniform(keys[5], H, 1),
    }


def ann_reference(x, p):
    h1 = jnp.maximum(x @ p["W1"] + p["b1"], 0.0)
    h2 = jnp.maximum(h1 @ p["W2"] + p["b2"], 0.0)
    return jax.nn.sigmoid(h2 @ p["W3"] + p["b3"])


if __name__ == "__main__":
    key = jax.random.PRNGKey(0)
    k_x, k_p, k_x2, k_x3 = jax.random.split(key, 4)

    input_feature = 32
    params = init_params(k_p, input_feature=input_feature,
                         num_hidden_layers=3, num_hidden_size=5)

    # Small batch: single full-array block (grid of 1).
    x = jax.random.normal(k_x, (8, input_feature), dtype=jnp.float32)
    out = jax.block_until_ready(ann_forward(x, params))
    ref = ann_reference(x, params)
    assert out.shape == (8, 1), out.shape
    assert jnp.allclose(out, ref, atol=1e-5, rtol=1e-5), (out, ref)

    # Multi-step grid with a partial boundary block (300 = 256 + 44).
    x2 = jax.random.normal(k_x2, (300, input_feature), dtype=jnp.float32)
    out2 = jax.block_until_ready(ann_forward(x2, params))
    ref2 = ann_reference(x2, params)
    assert out2.shape == (300, 1), out2.shape
    assert jnp.allclose(out2, ref2, atol=1e-5, rtol=1e-5), (out2, ref2)

    # Caller-supplied tile that is not a multiple of 128 (rounded up to 256).
    x3 = jax.random.normal(k_x3, (777, input_feature), dtype=jnp.float32)
    out3 = jax.block_until_ready(ann_forward(x3, params, tile_b=200))
    ref3 = ann_reference(x3, params)
    assert out3.shape == (777, 1), out3.shape
    assert jnp.allclose(out3, ref3, atol=1e-5, rtol=1e-5), (out3, ref3)

    print("KERNEL_OK")
</pallas_src>

<mosaic_0001>
module attributes {stable_mosaic.version = 11 : i64} {
  func.func @_ann_kernel(%arg0: i32, %arg1: memref<5x32xf32, #tpu.memory_space<vmem>>, %arg2: memref<5x1xf32, #tpu.memory_space<vmem>>, %arg3: memref<5x5xf32, #tpu.memory_space<vmem>>, %arg4: memref<5x1xf32, #tpu.memory_space<vmem>>, %arg5: memref<1x5xf32, #tpu.memory_space<vmem>>, %arg6: memref<1x1xf32, #tpu.memory_space<vmem>>, %arg7: memref<8x32xf32, #tpu.memory_space<vmem>>, %arg8: memref<1x8xf32, #tpu.memory_space<vmem>>) attributes {dimension_semantics = [#tpu.dimension_semantics<parallel>], iteration_bounds = array<i64: 1>, scalar_prefetch = 0 : i64, scratch_operands = 0 : i64, tpu.core_type = #tpu.core_type<tc>, window_params = [{pipeline_mode = #tpu.pipeline_mode<synchronous>, transform_indices = @transform_0, window_bounds = array<i64: 5, 32>}, {pipeline_mode = #tpu.pipeline_mode<synchronous>, transform_indices = @transform_1, window_bounds = array<i64: 5, 1>}, {pipeline_mode = #tpu.pipeline_mode<synchronous>, transform_indices = @transform_2, window_bounds = array<i64: 5, 5>}, {pipeline_mode = #tpu.pipeline_mode<synchronous>, transform_indices = @transform_3, window_bounds = array<i64: 5, 1>}, {pipeline_mode = #tpu.pipeline_mode<synchronous>, transform_indices = @transform_4, window_bounds = array<i64: 1, 5>}, {pipeline_mode = #tpu.pipeline_mode<synchronous>, transform_indices = @transform_5, window_bounds = array<i64: 1, 1>}, {transform_indices = @transform_6, window_bounds = array<i64: 8, 32>}, {transform_indices = @transform_7, window_bounds = array<i64: 1, 8>}]} {
    %c0 = arith.constant 0 : index
    %c0_0 = arith.constant 0 : index
    %0 = vector.load %arg7[%c0, %c0_0] : memref<8x32xf32, #tpu.memory_space<vmem>>, vector<8x32xf32>
    %c0_1 = arith.constant 0 : index
    %c0_2 = arith.constant 0 : index
    %1 = vector.load %arg1[%c0_1, %c0_2] : memref<5x32xf32, #tpu.memory_space<vmem>>, vector<5x32xf32>
    %cst = arith.constant dense<0.000000e+00> : vector<5x8xf32>
    %2 = tpu.matmul %1, %0, %cst {dimension_numbers = #tpu.dot_dimension_numbers<[1], [1], [0], [0], [0, 0, 1, 0], [], []>} : vector<5x32xf32>, vector<8x32xf32>, vector<5x8xf32> -> vector<5x8xf32>
    %c0_3 = arith.constant 0 : index
    %c0_4 = arith.constant 0 : index
    %3 = vector.load %arg2[%c0_3, %c0_4] : memref<5x1xf32, #tpu.memory_space<vmem>>, vector<5x1xf32>
    %4 = vector.broadcast %3 : vector<5x1xf32> to vector<5x8xf32>
    %5 = arith.addf %2, %4 : vector<5x8xf32>
    %cst_5 = arith.constant 0.000000e+00 : f32
    %6 = vector.broadcast %cst_5 : f32 to vector<5x8xf32>
    %7 = arith.maximumf %5, %6 : vector<5x8xf32>
    %c0_6 = arith.constant 0 : index
    %c0_7 = arith.constant 0 : index
    %8 = vector.load %arg3[%c0_6, %c0_7] : memref<5x5xf32, #tpu.memory_space<vmem>>, vector<5x5xf32>
    %cst_8 = arith.constant dense<0.000000e+00> : vector<5x8xf32>
    %9 = tpu.matmul %8, %7, %cst_8 {dimension_numbers = #tpu.dot_dimension_numbers<[1], [0], [0], [1], [0, 0, 1, 1], [], []>} : vector<5x5xf32>, vector<5x8xf32>, vector<5x8xf32> -> vector<5x8xf32>
    %c0_9 = arith.constant 0 : index
    %c0_10 = arith.constant 0 : index
    %10 = vector.load %arg4[%c0_9, %c0_10] : memref<5x1xf32, #tpu.memory_space<vmem>>, vector<5x1xf32>
    %11 = vector.broadcast %10 : vector<5x1xf32> to vector<5x8xf32>
    %12 = arith.addf %9, %11 : vector<5x8xf32>
    %cst_11 = arith.constant 0.000000e+00 : f32
    %13 = vector.broadcast %cst_11 : f32 to vector<5x8xf32>
    %14 = arith.maximumf %12, %13 : vector<5x8xf32>
    %c0_12 = arith.constant 0 : index
    %c0_13 = arith.constant 0 : index
    %15 = vector.load %arg5[%c0_12, %c0_13] : memref<1x5xf32, #tpu.memory_space<vmem>>, vector<1x5xf32>
    %cst_14 = arith.constant dense<0.000000e+00> : vector<1x8xf32>
    %16 = tpu.matmul %15, %14, %cst_14 {dimension_numbers = #tpu.dot_dimension_numbers<[1], [0], [0], [1], [0, 0, 1, 1], [], []>} : vector<1x5xf32>, vector<5x8xf32>, vector<1x8xf32> -> vector<1x8xf32>
    %c0_15 = arith.constant 0 : index
    %c0_16 = arith.constant 0 : index
    %17 = vector.load %arg6[%c0_15, %c0_16] : memref<1x1xf32, #tpu.memory_space<vmem>>, vector<1x1xf32>
    %18 = vector.broadcast %17 : vector<1x1xf32> to vector<1x8xf32>
    %19 = arith.addf %16, %18 : vector<1x8xf32>
    %20 = math.absf %19 : vector<1x8xf32>
    %cst_17 = arith.constant 0.000000e+00 : f32
    %21 = vector.broadcast %cst_17 : f32 to vector<1x8xf32>
    %22 = arith.subf %21, %20 : vector<1x8xf32>
    %23 = math.exp %22 : vector<1x8xf32>
    %cst_18 = arith.constant 1.000000e+00 : f32
    %24 = vector.broadcast %cst_18 : f32 to vector<1x8xf32>
    %25 = arith.addf %24, %23 : vector<1x8xf32>
    %cst_19 = arith.constant 1.000000e+00 : f32
    %26 = vector.broadcast %cst_19 : f32 to vector<1x8xf32>
    %27 = arith.divf %26, %25 : vector<1x8xf32>
    %cst_20 = arith.constant 0.000000e+00 : f32
    %28 = vector.broadcast %cst_20 : f32 to vector<1x8xf32>
    %29 = arith.cmpf oge, %19, %28 : vector<1x8xf32>
    %cst_21 = arith.constant 1.000000e+00 : f32
    %30 = vector.broadcast %cst_21 : f32 to vector<1x8xf32>
    %31 = arith.subf %30, %27 : vector<1x8xf32>
    %32 = arith.select %29, %27, %31 : vector<1x8xi1>, vector<1x8xf32>
    %c0_22 = arith.constant 0 : index
    %c0_23 = arith.constant 0 : index
    %33 = vector.load %arg8[%c0_22, %c0_23] : memref<1x8xf32, #tpu.memory_space<vmem>>, vector<1x8xf32>
    tpu.vector_store %arg8[%c0_22, %c0_23], %32 {strides = array<i32>} : memref<1x8xf32, #tpu.memory_space<vmem>>, vector<1x8xf32>,
    return
  }
  func.func @transform_0(%arg0: i32) -> (i32, i32) {
    %c0_i32 = arith.constant 0 : i32
    %c0_i32_0 = arith.constant 0 : i32
    %c0_i32_1 = arith.constant 0 : i32
    return %c0_i32, %c0_i32_0 : i32, i32
  }
  func.func @transform_1(%arg0: i32) -> (i32, i32) {
    %c0_i32 = arith.constant 0 : i32
    %c0_i32_0 = arith.constant 0 : i32
    %c0_i32_1 = arith.constant 0 : i32
    return %c0_i32, %c0_i32_0 : i32, i32
  }
  func.func @transform_2(%arg0: i32) -> (i32, i32) {
    %c0_i32 = arith.constant 0 : i32
    %c0_i32_0 = arith.constant 0 : i32
    %c0_i32_1 = arith.constant 0 : i32
    return %c0_i32, %c0_i32_0 : i32, i32
  }
  func.func @transform_3(%arg0: i32) -> (i32, i32) {
    %c0_i32 = arith.constant 0 : i32
    %c0_i32_0 = arith.constant 0 : i32
    %c0_i32_1 = arith.constant 0 : i32
    return %c0_i32, %c0_i32_0 : i32, i32
  }
  func.func @transform_4(%arg0: i32) -> (i32, i32) {
    %c0_i32 = arith.constant 0 : i32
    %c0_i32_0 = arith.constant 0 : i32
    %c0_i32_1 = arith.constant 0 : i32
    return %c0_i32, %c0_i32_0 : i32, i32
  }
  func.func @transform_5(%arg0: i32) -> (i32, i32) {
    %c0_i32 = arith.constant 0 : i32
    %c0_i32_0 = arith.constant 0 : i32
    %c0_i32_1 = arith.constant 0 : i32
    return %c0_i32, %c0_i32_0 : i32, i32
  }
  func.func @transform_6(%arg0: i32) -> (i32, i32) {
    %c0_i32 = arith.constant 0 : i32
    %c0_i32_0 = arith.constant 0 : i32
    return %arg0, %c0_i32 : i32, i32
  }
  func.func @transform_7(%arg0: i32) -> (i32, i32) {
    %c0_i32 = arith.constant 0 : i32
    %c0_i32_0 = arith.constant 0 : i32
    return %c0_i32, %arg0 : i32, i32
  }
}

</mosaic_0001>

<llo_original>
// kernel: tpu_custom_call.1
$region0: #{tpu_custom_call.1}
  #allocation0 [shape = 'u32[]', space=smem, size = 0x4, offset = 0x4, fixed_abs, tag = 'smem constant byte address 0x4 - core index']
  #allocation1 [shape = 'u32[144,128]{1,0:T(1,128)}', space=vmem, size = 0x12000, scoped, tag = 'internal scratch']
  #allocation2 [shape = 'f32[1,1]{1,0:T(1,128)S(1)}', space=vmem, size = 0x200, scoped, tag = 'scoped memory for tpu_custom_call.1']
  %s0 = inlined_call_operand.vmem [shape: f32[5,32], index: 0, kind: input, shape index: {}]
  %s1 = inlined_call_operand.vmem [shape: f32[5,1], index: 1, kind: input, shape index: {}]
  %s2 = inlined_call_operand.vmem [shape: f32[5,5], index: 2, kind: input, shape index: {}]
  %s3 = inlined_call_operand.vmem [shape: f32[5,1], index: 3, kind: input, shape index: {}]
  %s4 = inlined_call_operand.vmem [shape: f32[1,5], index: 4, kind: input, shape index: {}]
  %s5 = inlined_call_operand.<no memory space> [shape: f32[1,1], index: 5, kind: input, shape index: {}]
  %s6 = inlined_call_operand.vmem [shape: f32[8,32], index: 6, kind: input, shape index: {}]
  %s7 = inlined_call_operand.hbm [shape: f32[1,8], index: 7, kind: output, shape index: {}]
  %s8 = sld [smem:[#allocation0]]
  $region38: #{tpu_custom_call.1} parent=0
    _
  %s10 = ssub.s32 1, %s8
  %s11 = scalar_select 0, %s10, %s8
  %v12 = vstv %s5
  %13 = vst [vmem:[#allocation2] sm:$0x1] %v12
  $region1: #{tpu_custom_call.1} parent=0
    #allocation3 [shape = 'u8[512]{0}', space=vmem, size = 0x400, scoped, tag = 'output window, operand 0, single buffered']
    #allocation4 [shape = 's32[1]{0}', space=sflag, size = 0x4, scoped, tag = 'scoped memory for tpu_custom_call.1']
    %14 = vsyncpa [#allocation4], 0
    // Predicated region
    $region2: #{tpu_custom_call.1} parent=1 // pred_check
      _
    $region3: #{tpu_custom_call.1} parent=1 // pred_check_branch
      %16 = sbr.rel (0) target = $region5
    $region4: #{tpu_custom_call.1} parent=1 // pred_region
      _
    $region5: #{tpu_custom_call.1} parent=1 // pred_fallthru
      _
    // Predicated region
    $region6: #{tpu_custom_call.1} parent=1 // pred_check
      _
    $region7: #{tpu_custom_call.1} parent=1 // pred_check_branch
      %18 = sbr.rel (0) target = $region9
    $region8: #{tpu_custom_call.1} parent=1 // pred_region
      _
    $region9: #{tpu_custom_call.1} parent=1 // pred_fallthru
      _
    // Predicated region
    $region10: #{tpu_custom_call.1} parent=1 // pred_check
      _
    $region11: #{tpu_custom_call.1} parent=1 // pred_check_branch
      %20 = sbr.rel (0) target = $region13
    $region12: #{tpu_custom_call.1} parent=1 // pred_region
      _
    $region13: #{tpu_custom_call.1} parent=1 // pred_fallthru
      _
    // Predicated region
    $region14: #{tpu_custom_call.1} parent=1 // pred_check
      _
    $region15: #{tpu_custom_call.1} parent=1 // pred_check_branch
      %22 = sbr.rel (0) target = $region17
    $region16: #{tpu_custom_call.1} parent=1 // pred_region
      _
    $region17: #{tpu_custom_call.1} parent=1 // pred_fallthru
      _
    // Predicated region
    $region18: #{tpu_custom_call.1} parent=1 // pred_check
      _
    $region19: #{tpu_custom_call.1} parent=1 // pred_check_branch
      %24 = sbr.rel (0) target = $region21
    $region20: #{tpu_custom_call.1} parent=1 // pred_region
      _
    $region21: #{tpu_custom_call.1} parent=1 // pred_fallthru
      _
    // Predicated region
    $region22: #{tpu_custom_call.1} parent=1 // pred_check
      _
    $region23: #{tpu_custom_call.1} parent=1 // pred_check_branch
      %26 = sbr.rel (0) target = $region25
    $region24: #{tpu_custom_call.1} parent=1 // pred_region
      _
    $region25: #{tpu_custom_call.1} parent=1 // pred_fallthru
      _
    // Predicated region
    $region26: #{tpu_custom_call.1} parent=1 // pred_check
      _
    $region27: #{tpu_custom_call.1} parent=1 // pred_check_branch
      %28 = sbr.rel (0) target = $region29
    $region28: #{tpu_custom_call.1} parent=1 // pred_region
      _
    $region29: #{tpu_custom_call.1} parent=1 // pred_fallthru
      _
    %v29 = vld [vmem:[%s6] sm:$0xff]
    %v30 = vld [vmem:[%s0] sm:$0x1f]
    %v31 = vld [vmem:[%s1] sm:$0x1f]
    %33 = vset.pattern.permute.xlu0 0
    %34 = vperm.xlu0 %33, %v31
    %v35 = vpop.permute.xlu0 %34
    %vm37 = vcmask 261120
    %v39 = vsel %vm37, %v30, 0
    %v42 = vsel %vm37, %v29, 0
    %44 = vmatprep.subr.mxu0 0.0
    %45 = vmatpush1.xpose.msra.mxu0 0.0
    %46 = vmatprep.subr.mxu0 0.0
    %47 = vmatpush1.xpose.msra.mxu0 0.0
    %48 = vmatprep.subr.mxu0 0.0
    %49 = vmatpush1.xpose.msra.mxu0 0.0
    %50 = vmatprep.subr.mxu0 0.0
    %51 = vmatpush1.xpose.msra.mxu0 0.0
    %52 = vmatprep.subr.mxu0 0.0
    %53 = vmatpush1.xpose.msra.mxu0 0.0
    %54 = vmatprep.subr.mxu0 0.0
    %55 = vmatpush1.xpose.msra.mxu0 0.0
    %56 = vmatprep.subr.mxu0 0.0
    %57 = vmatpush1.xpose.msra.mxu0 0.0
    %58 = vmatprep.subr.mxu0 0.0
    %59 = vmatpush1.xpose.msra.mxu0 0.0
    %60 = vmatprep.subr.mxu0 0.0
    %61 = vmatpush1.xpose.msra.mxu0 0.0
    %62 = vmatprep.subr.mxu0 0.0
    %63 = vmatpush1.xpose.msra.mxu0 0.0
    %64 = vmatprep.subr.mxu0 0.0
    %65 = vmatpush1.xpose.msra.mxu0 0.0
    %66 = vmatprep.subr.mxu0 0.0
    %67 = vmatpush1.xpose.msra.mxu0 0.0
    %68 = vmatprep.subr.mxu0 0.0
    %69 = vmatpush1.xpose.msra.mxu0 0.0
    %70 = vmatprep.subr.mxu0 0.0
    %71 = vmatpush1.xpose.msra.mxu0 0.0
    %72 = vmatprep.subr.mxu0 0.0
    %73 = vmatpush1.xpose.msra.mxu0 0.0
    %74 = vmatprep.subr.mxu0 0.0
    %75 = vmatpush1.xpose.msra.mxu0 %v42
    %76 = vmatprep.subr.mxu0 0.0
    %77 = vmatpush2.xpose.msra.mxu0 0.0
    %78 = vmatprep.subr.mxu0 0.0
    %79 = vmatpush2.xpose.msra.mxu0 0.0
    %80 = vmatprep.subr.mxu0 0.0
    %81 = vmatpush2.xpose.msra.mxu0 0.0
    %82 = vmatprep.subr.mxu0 0.0
    %83 = vmatpush2.xpose.msra.mxu0 0.0
    %84 = vmatprep.subr.mxu0 0.0
    %85 = vmatpush2.xpose.msra.mxu0 0.0
    %86 = vmatprep.subr.mxu0 0.0
    %87 = vmatpush2.xpose.msra.mxu0 0.0
    %88 = vmatprep.subr.mxu0 0.0
    %89 = vmatpush2.xpose.msra.mxu0 0.0
    %90 = vmatprep.subr.mxu0 0.0
    %91 = vmatpush2.xpose.msra.mxu0 0.0
    %92 = vmatprep.subr.mxu0 0.0
    %93 = vmatpush2.xpose.msra.mxu0 0.0
    %94 = vmatprep.subr.mxu0 0.0
    %95 = vmatpush2.xpose.msra.mxu0 0.0
    %96 = vmatprep.subr.mxu0 0.0
    %97 = vmatpush2.xpose.msra.mxu0 0.0
    %98 = vmatprep.subr.mxu0 0.0
    %99 = vmatpush2.xpose.msra.mxu0 0.0
    %100 = vmatprep.subr.mxu0 0.0
    %101 = vmatpush2.xpose.msra.mxu0 0.0
    %102 = vmatprep.subr.mxu0 0.0
    %103 = vmatpush2.xpose.msra.mxu0 0.0
    %104 = vmatprep.subr.mxu0 0.0
    %105 = vmatpush2.xpose.msra.mxu0 0.0
    %106 = vmatprep.subr.mxu0 0.0
    %107 = vmatpush2.xpose.msra.mxu0 0.0
    %108 = vmatprep.mubr.f32.mxu0 0.0
    %109 = vmatmul.mubr.f32.gmra.mxu0 %v39
    %v110 = vpop.f32.mrf.mxu0
    %v111 = vadd.f32 %v35, %v110
    %v112 = vpop.f32.mrf.mxu0
    %113 = vdwg.mxu0
    %v114 = vmax.f32 %v111, 0.0
    %v115 = vld [vmem:[%s2] sm:$0x1f]
    %v116 = vld [vmem:[%s3] sm:$0x1f]
    %118 = vset.pattern.permute.xlu0 0
    %119 = vperm.xlu0 %118, %v116
    %v120 = vpop.permute.xlu0 %119
    %vm122 = vcmask 39936
    %v124 = vsel %vm122, %v115, 0
    %vm126 = vcmask 1044480
    %v128 = vsel %vm126, %v114, 0
    %130 = vmatprep.subr.mxu0 0.0
    %131 = vmatpush1.msra.mxu0 0.0
    %132 = vmatprep.subr.mxu0 0.0
    %133 = vmatpush1.msra.mxu0 0.0
    %134 = vmatprep.subr.mxu0 0.0
    %135 = vmatpush1.msra.mxu0 0.0
    %136 = vmatprep.subr.mxu0 0.0
    %137 = vmatpush1.msra.mxu0 0.0
    %138 = vmatprep.subr.mxu0 0.0
    %139 = vmatpush1.msra.mxu0 0.0
    %140 = vmatprep.subr.mxu0 0.0
    %141 = vmatpush1.msra.mxu0 0.0
    %142 = vmatprep.subr.mxu0 0.0
    %143 = vmatpush1.msra.mxu0 0.0
    %144 = vmatprep.subr.mxu0 0.0
    %145 = vmatpush1.msra.mxu0 0.0
    %146 = vmatprep.subr.mxu0 0.0
    %147 = vmatpush1.msra.mxu0 0.0
    %148 = vmatprep.subr.mxu0 0.0
    %149 = vmatpush1.msra.mxu0 0.0
    %150 = vmatprep.subr.mxu0 0.0
    %151 = vmatpush1.msra.mxu0 0.0
    %152 = vmatprep.subr.mxu0 0.0
    %153 = vmatpush1.msra.mxu0 0.0
    %154 = vmatprep.subr.mxu0 0.0
    %155 = vmatpush1.msra.mxu0 0.0
    %156 = vmatprep.subr.mxu0 0.0
    %157 = vmatpush1.msra.mxu0 0.0
    %158 = vmatprep.subr.mxu0 0.0
    %159 = vmatpush1.msra.mxu0 0.0
    %160 = vmatprep.subr.mxu0 0.0
    %161 = vmatpush1.msra.mxu0 %v128
    %162 = vmatprep.subr.mxu0 0.0
    %163 = vmatpush2.msra.mxu0 0.0
    %164 = vmatprep.subr.mxu0 0.0
    %165 = vmatpush2.msra.mxu0 0.0
    %166 = vmatprep.subr.mxu0 0.0
    %167 = vmatpush2.msra.mxu0 0.0
    %168 = vmatprep.subr.mxu0 0.0
    %169 = vmatpush2.msra.mxu0 0.0
    %170 = vmatprep.subr.mxu0 0.0
    %171 = vmatpush2.msra.mxu0 0.0
    %172 = vmatprep.subr.mxu0 0.0
    %173 = vmatpush2.msra.mxu0 0.0
    %174 = vmatprep.subr.mxu0 0.0
    %175 = vmatpush2.msra.mxu0 0.0
    %176 = vmatprep.subr.mxu0 0.0
    %177 = vmatpush2.msra.mxu0 0.0
    %178 = vmatprep.subr.mxu0 0.0
    %179 = vmatpush2.msra.mxu0 0.0
    %180 = vmatprep.subr.mxu0 0.0
    %181 = vmatpush2.msra.mxu0 0.0
    %182 = vmatprep.subr.mxu0 0.0
    %183 = vmatpush2.msra.mxu0 0.0
    %184 = vmatprep.subr.mxu0 0.0
    %185 = vmatpush2.msra.mxu0 0.0
    %186 = vmatprep.subr.mxu0 0.0
    %187 = vmatpush2.msra.mxu0 0.0
    %188 = vmatprep.subr.mxu0 0.0
    %189 = vmatpush2.msra.mxu0 0.0
    %190 = vmatprep.subr.mxu0 0.0
    %191 = vmatpush2.msra.mxu0 0.0
    %192 = vmatprep.subr.mxu0 0.0
    %193 = vmatpush2.msra.mxu0 0.0
    %194 = vmatprep.mubr.f32.mxu0 0.0
    %195 = vmatmul.mubr.f32.gmra.mxu0 %v124
    %v196 = vpop.f32.mrf.mxu0
    %v197 = vadd.f32 %v120, %v196
    %v198 = vpop.f32.mrf.mxu0
    %199 = vdwg.mxu0
    %v200 = vmax.f32 %v197, 0.0
    %v201 = vld [vmem:[%s4] sm:$0x1]
    %v202 = vld [vmem:[#allocation2] sm:$0x1]
    %204 = vset.pattern.permute.xlu0 0
    %205 = vperm.xlu0 %204, %v202
    %v206 = vpop.permute.xlu0 %205
    %v208 = vlaneseq
    %v209 = vshrl.u32 %v208, 7
    %v210 = vsub.s32 0, %v209
    %v211 = vrot.slane %v206, %v210
    %v213 = vsel %vm122, %v201, 0
    %v216 = vsel %vm126, %v200, 0
    %218 = vmatprep.subr.mxu0 0.0
    %219 = vmatpush1.msra.mxu0 0.0
    %220 = vmatprep.subr.mxu0 0.0
    %221 = vmatpush1.msra.mxu0 0.0
    %222 = vmatprep.subr.mxu0 0.0
    %223 = vmatpush1.msra.mxu0 0.0
    %224 = vmatprep.subr.mxu0 0.0
    %225 = vmatpush1.msra.mxu0 0.0
    %226 = vmatprep.subr.mxu0 0.0
    %227 = vmatpush1.msra.mxu0 0.0
    %228 = vmatprep.subr.mxu0 0.0
    %229 = vmatpush1.msra.mxu0 0.0
    %230 = vmatprep.subr.mxu0 0.0
    %231 = vmatpush1.msra.mxu0 0.0
    %232 = vmatprep.subr.mxu0 0.0
    %233 = vmatpush1.msra.mxu0 0.0
    %234 = vmatprep.subr.mxu0 0.0
    %235 = vmatpush1.msra.mxu0 0.0
    %236 = vmatprep.subr.mxu0 0.0
    %237 = vmatpush1.msra.mxu0 0.0
    %238 = vmatprep.subr.mxu0 0.0
    %239 = vmatpush1.msra.mxu0 0.0
    %240 = vmatprep.subr.mxu0 0.0
    %241 = vmatpush1.msra.mxu0 0.0
    %242 = vmatprep.subr.mxu0 0.0
    %243 = vmatpush1.msra.mxu0 0.0
    %244 = vmatprep.subr.mxu0 0.0
    %245 = vmatpush1.msra.mxu0 0.0
    %246 = vmatprep.subr.mxu0 0.0
    %247 = vmatpush1.msra.mxu0 0.0
    %248 = vmatprep.subr.mxu0 0.0
    %249 = vmatpush1.msra.mxu0 %v216
    %250 = vmatprep.subr.mxu0 0.0
    %251 = vmatpush2.msra.mxu0 0.0
    %252 = vmatprep.subr.mxu0 0.0
    %253 = vmatpush2.msra.mxu0 0.0
    %254 = vmatprep.subr.mxu0 0.0
    %255 = vmatpush2.msra.mxu0 0.0
    %256 = vmatprep.subr.mxu0 0.0
    %257 = vmatpush2.msra.mxu0 0.0
    %258 = vmatprep.subr.mxu0 0.0
    %259 = vmatpush2.msra.mxu0 0.0
    %260 = vmatprep.subr.mxu0 0.0
    %261 = vmatpush2.msra.mxu0 0.0
    %262 = vmatprep.subr.mxu0 0.0
    %263 = vmatpush2.msra.mxu0 0.0
    %264 = vmatprep.subr.mxu0 0.0
    %265 = vmatpush2.msra.mxu0 0.0
    %266 = vmatprep.subr.mxu0 0.0
    %267 = vmatpush2.msra.mxu0 0.0
    %268 = vmatprep.subr.mxu0 0.0
    %269 = vmatpush2.msra.mxu0 0.0
    %270 = vmatprep.subr.mxu0 0.0
    %271 = vmatpush2.msra.mxu0 0.0
    %272 = vmatprep.subr.mxu0 0.0
    %273 = vmatpush2.msra.mxu0 0.0
    %274 = vmatprep.subr.mxu0 0.0
    %275 = vmatpush2.msra.mxu0 0.0
    %276 = vmatprep.subr.mxu0 0.0
    %277 = vmatpush2.msra.mxu0 0.0
    %278 = vmatprep.subr.mxu0 0.0
    %279 = vmatpush2.msra.mxu0 0.0
    %280 = vmatprep.subr.mxu0 0.0
    %281 = vmatpush2.msra.mxu0 0.0
    %282 = vmatprep.mubr.f32.mxu0 0.0
    %283 = vmatmul.mubr.f32.gmra.mxu0 %v213
    %v284 = vpop.f32.mrf.mxu0
    %v285 = vadd.f32 %v211, %v284
    %v286 = vpop.f32.mrf.mxu0
    %287 = vdwg.mxu0
    %v288 = vand.u32 2147483647, %v285
    %v289 = vsub.f32 0.0, %v288
    %v290 = vmul.f32 %v289, 1.442695
    %v291 = vpow.pop %v290
    %v292 = vadd.f32 %v291, 1.0
    %v293 = vrcp.pop %v292
    %v294 = vmul.f32 1.0, %v293
    %vm295 = vcmp.ge.f32.partialorder %v285, 0.0
    %v296 = vsub.f32 1.0, %v294
    %v297 = vsel %vm295, %v294, %v296
    %vm298 = vcmask 57344
    %299 = vst.msk [vmem:[#allocation3] sm:$0x1] %vm298, %v297
    // Predicated region
    $region30: #{tpu_custom_call.1} parent=1 // pred_check
      _
    $region31: #{tpu_custom_call.1} parent=1 // pred_check_branch
      %301 = sbr.rel (0) target = $region33
    $region32: #{tpu_custom_call.1} parent=1 // pred_region
      %s303 = ssub.s32 16, 16
      %304 = vsyncadd [#allocation4], %s303
      %s306 = sshll.u32 [#allocation3], 4
      %s307 = int_to_ptr.vmem [resolvable:$true] %s306
      %309 = dma.vmem_to_hbm [thread:$0]  %s307, 16, %s7, [#allocation4]
    $region33: #{tpu_custom_call.1} parent=1 // pred_fallthru
      _
    // Predicated region
    $region34: #{tpu_custom_call.1} parent=1 // pred_check
      _
    $region35: #{tpu_custom_call.1} parent=1 // pred_check_branch
      %311 = sbr.rel (0) target = $region37
    $region36: #{tpu_custom_call.1} parent=1 // pred_region
      %312 = dma.done [#allocation4], 16
    $region37: #{tpu_custom_call.1} parent=1 // pred_fallthru
      _
    %313 = vsyncpa [#allocation4], 1

</llo_original>
